<compile_context>
chip_gen: v6e
topology: v6e:2x2x1
jax: 0.10.0
libtpu: 0.0.40
codegen_flags: <defaults>
</compile_context>

<pallas_src>
import functools

import jax
import jax.numpy as jnp
from jax import lax
from jax.experimental import pallas as pl
from jax.experimental.pallas import tpu as pltpu


_VMEM_LIMIT = 48 * 1024 * 1024
_TARGET_ROWS = 1024            # >=512-row tiles sit at the HBM-roofline knee


def _round_up(x, m):
    return ((x + m - 1) // m) * m


def _cdiv(a, b):
    return -(-a // b)


# ------------------------------ phase-1 kernels ------------------------------ #

def _conv_stats_folded_kernel(x_ref, w_ref, conv_ref, stats_ref):
    """Single-matmul conv (taps folded into K) + per-tile BN partial stats.

    x_ref:     (TR, Kf)      bf16  im2col lhs tile (pad rows are exact zeros)
    w_ref:     (Kf, Cout_p)  bf16
    conv_ref:  (TR, Cout_p)  bf16  conv output tile (lane-dense)
    stats_ref: (2, Cout_p)   f32   per-tile (sum, sum_sq)
    """
    acc = jnp.dot(x_ref[...], w_ref[...], preferred_element_type=jnp.float32)
    conv_ref[...] = acc.astype(conv_ref.dtype)
    # Pad rows are exactly zero in the lhs -> they contribute 0 to both partials.
    stats_ref[0:1, :] = jnp.sum(acc, axis=0, keepdims=True)
    stats_ref[1:2, :] = jnp.sum(acc * acc, axis=0, keepdims=True)


def _conv_stats_taps_kernel(x_ref, w_ref, mask_ref, conv_ref, stats_ref, *,
                            tap_offsets, tr):
    """Per-tap accumulated matmuls over a haloed row block + partial BN stats.

    x_ref:     (TR + halo, Cin)    bf16  flattened padded rows (with halo)
    w_ref:     (k*k, Cin, Cout_p)  bf16  per-tap weight matrices
    mask_ref:  (TR, Cout_p)        bf16  1 on valid output positions (lane-dense)
    conv_ref:  (TR, Cout_p)        bf16
    stats_ref: (2, Cout_p)         f32
    """
    s0 = tap_offsets[0]
    acc = jnp.dot(x_ref[s0:s0 + tr, :], w_ref[0],
                  preferred_element_type=jnp.float32)
    for t in range(1, len(tap_offsets)):
        s = tap_offsets[t]
        acc = acc + jnp.dot(x_ref[s:s + tr, :], w_ref[t],
                            preferred_element_type=jnp.float32)
    conv_ref[...] = acc.astype(conv_ref.dtype)
    masked = acc * mask_ref[...].astype(jnp.float32)   # drop wrap/tail rows from stats
    stats_ref[0:1, :] = jnp.sum(masked, axis=0, keepdims=True)
    stats_ref[1:2, :] = jnp.sum(masked * acc, axis=0, keepdims=True)


# ------------------------------ phase-2 kernel ------------------------------- #

def _bn_relu_kernel(conv_ref, scale_ref, shift_ref, o_ref):
    """BN folded to a single scale/shift + ReLU: one FMA + max per element."""
    y = conv_ref[...].astype(jnp.float32) * scale_ref[...] + shift_ref[...]
    o_ref[...] = jnp.maximum(y, 0.0).astype(o_ref.dtype)


# --------------------------------- helpers ----------------------------------- #

def _fold_bn(stats_sum, count, gamma_p, beta_p, eps):
    mean = stats_sum[0] / count
    # TODO(synk): E[x^2]-E[x]^2 in f32 can cancel for very large counts/means; a
    # mean-centered / Welford-style merge would be more robust at production sizes.
    var = jnp.maximum(stats_sum[1] / count - mean * mean, 0.0)   # biased (train-mode BN)
    inv = lax.rsqrt(var + eps)
    scale = (gamma_p * inv).reshape(1, -1)
    shift = (beta_p - mean * gamma_p * inv).reshape(1, -1)
    return scale, shift


def _bn_relu_apply(conv_flat, scale, shift, tr, out_dtype):
    m_tot, cout_p = conv_flat.shape
    nblk = m_tot // tr
    # TODO(synk): alias conv_flat's buffer via input_output_aliases when the caller
    # accepts a bf16 output (dtypes currently differ, so no aliasing here).
    return pl.pallas_call(
        _bn_relu_kernel,
        grid=(nblk,),
        in_specs=[
            pl.BlockSpec((tr, cout_p), lambda b: (b, 0)),
            pl.BlockSpec((1, cout_p), lambda b: (0, 0)),
            pl.BlockSpec((1, cout_p), lambda b: (0, 0)),
        ],
        out_specs=pl.BlockSpec((tr, cout_p), lambda b: (b, 0)),
        out_shape=jax.ShapeDtypeStruct((m_tot, cout_p), out_dtype),
        compiler_params=pltpu.CompilerParams(
            dimension_semantics=("parallel",), vmem_limit_bytes=_VMEM_LIMIT),
    )(conv_flat, scale, shift)


# --------------------------------- wrapper ------------------------------------ #

def conv_bn_relu(x_nchw, w_oihw, gamma, beta, *, kernel_size=3, dilation=1,
                 eps=1e-5):
    """Fused Conv2d(bias=False) + BatchNorm2d(train-mode stats) + ReLU."""
    N, Cin, H, W = x_nchw.shape
    Cout = w_oihw.shape[0]
    k, d = kernel_size, dilation
    pad = k // 2 if d == 1 else d                     # exact PyTorch-module formula
    Ho = H + 2 * pad - d * (k - 1)
    Wo = W + 2 * pad - d * (k - 1)
    Hp, Wp = H + 2 * pad, W + 2 * pad

    # Lane-dense output channels: 128, or multiples of 256 beyond that (2x256 MXU).
    Cout_p = 128 if Cout <= 128 else _round_up(Cout, 256)
    Kf = k * k * Cin
    out_dtype = x_nchw.dtype

    # TODO(synk): keep NHWC end-to-end when the caller's layout allows, dropping the
    # NCHW<->NHWC transposes around the kernels.
    x_nhwc = jnp.transpose(x_nchw, (0, 2, 3, 1))

    gamma_p = jnp.pad(gamma.astype(jnp.float32), (0, Cout_p - Cout))
    beta_p = jnp.pad(beta.astype(jnp.float32), (0, Cout_p - Cout))
    count = float(N * Ho * Wo)

    if Kf <= 128:
        # -------- folded path: one matmul with K = k*k*Cin (small-Cin layers) --------
        xp = jnp.pad(x_nhwc, ((0, 0), (pad, pad), (pad, pad), (0, 0)))
        taps = [xp[:, ky * d:ky * d + Ho, kx * d:kx * d + Wo, :]
                for ky in range(k) for kx in range(k)]
        lhs = jnp.concatenate(taps, axis=-1).reshape(N * Ho * Wo, Kf)
        M = N * Ho * Wo
        TR = min(_TARGET_ROWS, _round_up(M, 16))
        Mb = _cdiv(M, TR)
        M_p = Mb * TR
        lhs = jnp.pad(lhs, ((0, M_p - M), (0, 0))).astype(jnp.bfloat16)

        wmat = jnp.transpose(w_oihw, (2, 3, 1, 0)).reshape(Kf, Cout)
        wmat = jnp.pad(wmat, ((0, 0), (0, Cout_p - Cout))).astype(jnp.bfloat16)

        conv_flat, stats = pl.pallas_call(
            _conv_stats_folded_kernel,
            grid=(Mb,),
            in_specs=[
                pl.BlockSpec((TR, Kf), lambda b: (b, 0)),
                pl.BlockSpec((Kf, Cout_p), lambda b: (0, 0)),   # constant -> revisited
            ],
            out_specs=[
                pl.BlockSpec((TR, Cout_p), lambda b: (b, 0)),
                pl.BlockSpec((None, 2, Cout_p), lambda b: (b, 0, 0)),
            ],
            out_shape=[
                jax.ShapeDtypeStruct((M_p, Cout_p), jnp.bfloat16),
                jax.ShapeDtypeStruct((Mb, 2, Cout_p), jnp.float32),
            ],
            compiler_params=pltpu.CompilerParams(
                dimension_semantics=("parallel",), vmem_limit_bytes=_VMEM_LIMIT),
        )(lhs, wmat)

        scale, shift = _fold_bn(jnp.sum(stats, axis=0), count, gamma_p, beta_p, eps)
        y_flat = _bn_relu_apply(conv_flat, scale, shift, TR, out_dtype)
        y = y_flat[:M, :Cout].reshape(N, Ho, Wo, Cout)
        return jnp.transpose(y, (0, 3, 1, 2))

    # -------- general path: in-kernel k*k-tap matmuls over haloed row blocks --------
    Wpp = _round_up(Wp, 16)                     # sublane-aligned virtual row stride
    xp = jnp.pad(x_nhwc, ((0, 0), (pad, pad), (pad, pad + (Wpp - Wp)), (0, 0)))
    halo = d * ((k - 1) * Wpp + (k - 1))        # max tap offset
    R = Ho * Wpp                                # virtual rows per sample (incl. wrap cols)
    TRr = max(1, min(Ho, _TARGET_ROWS // Wpp))  # image rows per block
    TR = TRr * Wpp
    nb = _cdiv(Ho, TRr)
    R_p = nb * TR
    Lt = max(Hp * Wpp, R_p + halo)

    x_flat = xp.reshape(N, Hp * Wpp, Cin)
    x_flat = jnp.pad(x_flat, ((0, 0), (0, Lt - Hp * Wpp), (0, 0))).astype(jnp.bfloat16)
    # Restage into overlapping (TR + halo)-row blocks so the tap slices stay in-tile
    # (~1.05x extra activation copy; BlockSpec cannot express overlapping windows).
    x_blocks = jnp.stack(
        [x_flat[:, rb * TR: rb * TR + TR + halo, :] for rb in range(nb)], axis=1)

    wtap = jnp.transpose(w_oihw, (2, 3, 1, 0)).reshape(k * k, Cin, Cout)
    wtap = jnp.pad(wtap, ((0, 0), (0, 0), (0, Cout_p - Cout))).astype(jnp.bfloat16)

    # Lane-dense validity mask over one sample's virtual rows (wrap cols + tail rows).
    r = jnp.arange(R_p)
    valid = ((r % Wpp) < Wo) & (r < R)
    mask = jnp.broadcast_to(valid[:, None], (R_p, Cout_p)).astype(jnp.bfloat16)

    tap_offsets = tuple(d * (ky * Wpp + kx) for ky in range(k) for kx in range(k))
    kernel = functools.partial(_conv_stats_taps_kernel,
                               tap_offsets=tap_offsets, tr=TR)

    conv_flat, stats = pl.pallas_call(
        kernel,
        grid=(N, nb),
        in_specs=[
            pl.BlockSpec((None, None, TR + halo, Cin), lambda n, rb: (n, rb, 0, 0)),
            pl.BlockSpec((k * k, Cin, Cout_p), lambda n, rb: (0, 0, 0)),
            pl.BlockSpec((TR, Cout_p), lambda n, rb: (rb, 0)),
        ],
        out_specs=[
            pl.BlockSpec((TR, Cout_p), lambda n, rb: (n * nb + rb, 0)),
            pl.BlockSpec((None, None, 2, Cout_p), lambda n, rb: (n, rb, 0, 0)),
        ],
        out_shape=[
            jax.ShapeDtypeStruct((N * R_p, Cout_p), jnp.bfloat16),
            jax.ShapeDtypeStruct((N, nb, 2, Cout_p), jnp.float32),
        ],
        compiler_params=pltpu.CompilerParams(
            dimension_semantics=("parallel", "parallel"),
            vmem_limit_bytes=_VMEM_LIMIT),
    )(x_blocks, wtap, mask)

    scale, shift = _fold_bn(jnp.sum(stats, axis=(0, 1)), count, gamma_p, beta_p, eps)
    y_flat = _bn_relu_apply(conv_flat, scale, shift, TR, out_dtype)
    y = y_flat.reshape(N, R_p, Cout_p)[:, :R, :]
    y = y.reshape(N, Ho, Wpp, Cout_p)[:, :, :Wo, :Cout]
    return jnp.transpose(y, (0, 3, 1, 2))


# -------------------------------- reference ----------------------------------- #

def _reference(x, w, gamma, beta, *, kernel_size, dilation, eps=1e-5):
    k, d = kernel_size, dilation
    pad = k // 2 if d == 1 else d
    conv = lax.conv_general_dilated(
        x, w, window_strides=(1, 1), padding=[(pad, pad), (pad, pad)],
        rhs_dilation=(d, d), dimension_numbers=("NCHW", "OIHW", "NCHW"),
        precision=lax.Precision.HIGHEST)
    mean = jnp.mean(conv, axis=(0, 2, 3), keepdims=True)
    var = jnp.mean(jnp.square(conv - mean), axis=(0, 2, 3), keepdims=True)
    y = (conv - mean) * lax.rsqrt(var + eps) * gamma.reshape(1, -1, 1, 1) \
        + beta.reshape(1, -1, 1, 1)
    return jnp.maximum(y, 0.0)


if __name__ == "__main__":
    # TODO(synk): BatchNorm running_mean/running_var momentum updates (module state)
    # are not produced; only the forward activation is computed.
    key = jax.random.PRNGKey(0)

    def run_case(case_key, N, Cin, H, W, Cout, ksz, dil):
        kx, kw, kg, kb = jax.random.split(case_key, 4)
        x = jax.random.normal(kx, (N, Cin, H, W), jnp.float32)
        fan_in = Cin * ksz * ksz
        w = jax.random.normal(kw, (Cout, Cin, ksz, ksz), jnp.float32) * (1.0 / fan_in) ** 0.5
        gamma = 1.0 + 0.1 * jax.random.normal(kg, (Cout,), jnp.float32)
        beta = 0.1 * jax.random.normal(kb, (Cout,), jnp.float32)

        out = conv_bn_relu(x, w, gamma, beta, kernel_size=ksz, dilation=dil)
        out = jax.block_until_ready(out)
        ref = _reference(x, w, gamma, beta, kernel_size=ksz, dilation=dil)
        assert out.shape == ref.shape, (out.shape, ref.shape)
        err = jnp.max(jnp.abs(out - ref))
        assert jnp.allclose(out, ref, atol=2e-2, rtol=2e-2), f"max abs err {err}"

    k1, k2 = jax.random.split(key)
    # Small-Cin layer (k*k*Cin <= 128): folded single-matmul path.
    run_case(k1, N=2, Cin=4, H=16, W=16, Cout=8, ksz=3, dil=1)
    # Larger-Cin, dilated layer (k*k*Cin > 128): in-kernel tap-loop path.
    run_case(k2, N=2, Cin=16, H=12, W=12, Cout=8, ksz=3, dil=2)

    print("KERNEL_OK")
</pallas_src>

<mosaic_0001>
module attributes {stable_mosaic.version = 11 : i64} {
  func.func @_conv_stats_folded_kernel(%arg0: i32, %arg1: memref<512x36xbf16, #tpu.memory_space<vmem>>, %arg2: memref<36x128xbf16, #tpu.memory_space<vmem>>, %arg3: memref<512x128xbf16, #tpu.memory_space<vmem>>, %arg4: memref<1x2x128xf32, #tpu.memory_space<vmem>>) attributes {dimension_semantics = [#tpu.dimension_semantics<parallel>], iteration_bounds = array<i64: 1>, scalar_prefetch = 0 : i64, scratch_operands = 0 : i64, tpu.core_type = #tpu.core_type<tc>, window_params = [{transform_indices = @transform_0, window_bounds = array<i64: 512, 36>}, {pipeline_mode = #tpu.pipeline_mode<synchronous>, transform_indices = @transform_1, window_bounds = array<i64: 36, 128>}, {transform_indices = @transform_2, window_bounds = array<i64: 512, 128>}, {transform_indices = @transform_3, window_bounds = array<i64: 1, 2, 128>}]} {
    %c0 = arith.constant 0 : index
    %c0_0 = arith.constant 0 : index
    %0 = vector.load %arg1[%c0, %c0_0] : memref<512x36xbf16, #tpu.memory_space<vmem>>, vector<512x36xbf16>
    %c0_1 = arith.constant 0 : index
    %c0_2 = arith.constant 0 : index
    %1 = vector.load %arg2[%c0_1, %c0_2] : memref<36x128xbf16, #tpu.memory_space<vmem>>, vector<36x128xbf16>
    %cst = arith.constant dense<0.000000e+00> : vector<512x128xf32>
    %2 = tpu.matmul %0, %1, %cst {dimension_numbers = #tpu.dot_dimension_numbers<[1], [0], [0], [1], [0, 0, 1, 1], [], []>} : vector<512x36xbf16>, vector<36x128xbf16>, vector<512x128xf32> -> vector<512x128xf32>
    %3 = arith.truncf %2 : vector<512x128xf32> to vector<512x128xbf16>
    %c0_3 = arith.constant 0 : index
    %c0_4 = arith.constant 0 : index
    %4 = vector.load %arg3[%c0_3, %c0_4] : memref<512x128xbf16, #tpu.memory_space<vmem>>, vector<512x128xbf16>
    tpu.vector_store %arg3[%c0_3, %c0_4], %3 {strides = array<i32>} : memref<512x128xbf16, #tpu.memory_space<vmem>>, vector<512x128xbf16>,
    %cst_5 = arith.constant dense<0.000000e+00> : vector<128xf32>
    %5 = vector.multi_reduction <add>, %2, %cst_5 [0] : vector<512x128xf32> to vector<128xf32>
    %6 = vector.shape_cast %5 : vector<128xf32> to vector<1x128xf32>
    %c0_6 = arith.constant 0 : index
    %c0_7 = arith.constant 0 : index
    %c0_8 = arith.constant 0 : index
    %7 = vector.load %arg4[%c0_6, %c0_7, %c0_8] : memref<1x2x128xf32, #tpu.memory_space<vmem>>, vector<1x1x128xf32>
    %8 = vector.shape_cast %7 : vector<1x1x128xf32> to vector<1x128xf32>
    %9 = vector.shape_cast %6 : vector<1x128xf32> to vector<1x1x128xf32>
    tpu.vector_store %arg4[%c0_6, %c0_7, %c0_8], %9 {strides = array<i32>} : memref<1x2x128xf32, #tpu.memory_space<vmem>>, vector<1x1x128xf32>,
    %10 = arith.mulf %2, %2 : vector<512x128xf32>
    %cst_9 = arith.constant dense<0.000000e+00> : vector<128xf32>
    %11 = vector.multi_reduction <add>, %10, %cst_9 [0] : vector<512x128xf32> to vector<128xf32>
    %12 = vector.shape_cast %11 : vector<128xf32> to vector<1x128xf32>
    %c0_10 = arith.constant 0 : index
    %c1 = arith.constant 1 : index
    %c0_11 = arith.constant 0 : index
    %13 = vector.load %arg4[%c0_10, %c1, %c0_11] : memref<1x2x128xf32, #tpu.memory_space<vmem>>, vector<1x1x128xf32>
    %14 = vector.shape_cast %13 : vector<1x1x128xf32> to vector<1x128xf32>
    %15 = vector.shape_cast %12 : vector<1x128xf32> to vector<1x1x128xf32>
    tpu.vector_store %arg4[%c0_10, %c1, %c0_11], %15 {strides = array<i32>} : memref<1x2x128xf32, #tpu.memory_space<vmem>>, vector<1x1x128xf32>,
    return
  }
  func.func @transform_0(%arg0: i32) -> (i32, i32) {
    %c0_i32 = arith.constant 0 : i32
    %c0_i32_0 = arith.constant 0 : i32
    return %arg0, %c0_i32 : i32, i32
  }
  func.func @transform_1(%arg0: i32) -> (i32, i32) {
    %c0_i32 = arith.constant 0 : i32
    %c0_i32_0 = arith.constant 0 : i32
    %c0_i32_1 = arith.constant 0 : i32
    return %c0_i32, %c0_i32_0 : i32, i32
  }
  func.func @transform_2(%arg0: i32) -> (i32, i32) {
    %c0_i32 = arith.constant 0 : i32
    %c0_i32_0 = arith.constant 0 : i32
    return %arg0, %c0_i32 : i32, i32
  }
  func.func @transform_3(%arg0: i32) -> (i32, i32, i32) {
    %c0_i32 = arith.constant 0 : i32
    %c0_i32_0 = arith.constant 0 : i32
    %c0_i32_1 = arith.constant 0 : i32
    return %arg0, %c0_i32, %c0_i32_0 : i32, i32, i32
  }
}

</mosaic_0001>

<llo_original>
// kernel: tpu_custom_call.1
$region0: #{tpu_custom_call.1}
  #allocation0 [shape = 'u32[]', space=smem, size = 0x4, offset = 0x4, fixed_abs, tag = 'smem constant byte address 0x4 - core index']
  #allocation1 [shape = 'u32[144,128]{1,0:T(1,128)}', space=vmem, size = 0x12000, scoped, tag = 'internal scratch']
  %s0 = inlined_call_operand.vmem [shape: bf16[512,36], index: 0, kind: input, shape index: {}]
  %s1 = inlined_call_operand.vmem [shape: bf16[36,128], index: 1, kind: input, shape index: {}]
  %s2 = inlined_call_operand.hbm [shape: bf16[512,128], index: 2, kind: output, shape index: {0}]
  %s3 = inlined_call_operand.hbm [shape: f32[1,2,128], index: 3, kind: output, shape index: {1}]
  %4 = xla_tuple %s2, %s3
  %s5 = sld [smem:[#allocation0]]
  $region26: #{tpu_custom_call.1} parent=0
    _
  %s7 = ssub.s32 1, %s5
  %s8 = scalar_select 0, %s7, %s5
  $region1: #{tpu_custom_call.1} parent=0
    #allocation2 [shape = 'u8[131072]{0}', space=vmem, size = 0x20000, scoped, tag = 'output window, operand 0, single buffered']
    #allocation3 [shape = 's32[1]{0}', space=sflag, size = 0x4, scoped, tag = 'scoped memory for tpu_custom_call.1']
    #allocation4 [shape = 'u8[1024]{0}', space=vmem, size = 0x400, scoped, tag = 'output window, operand 1, single buffered']
    #allocation5 [shape = 's32[1]{0}', space=sflag, size = 0x4, scoped, tag = 'scoped memory for tpu_custom_call.1']
    %9 = vsyncpa [#allocation3], 0
    %10 = vsyncpa [#allocation5], 0
    // Predicated region
    $region2: #{tpu_custom_call.1} parent=1 // pred_check
      _
    $region3: #{tpu_custom_call.1} parent=1 // pred_check_branch
      %12 = sbr.rel (0) target = $region5
    $region4: #{tpu_custom_call.1} parent=1 // pred_region
      _
    $region5: #{tpu_custom_call.1} parent=1 // pred_fallthru
      _
    // Predicated region
    $region6: #{tpu_custom_call.1} parent=1 // pred_check
      _
    $region7: #{tpu_custom_call.1} parent=1 // pred_check_branch
      %14 = sbr.rel (0) target = $region9
    $region8: #{tpu_custom_call.1} parent=1 // pred_region
      _
    $region9: #{tpu_custom_call.1} parent=1 // pred_fallthru
      _
    %v16 = vld [vmem:[%s0] sm:$0xf]
    %v17 = vld [vmem:[%s0 + $0x4] sm:$0xf]
    %v18 = vld [vmem:[%s0 + $0x8] sm:$0xf]
    %v19 = vld [vmem:[%s0 + $0xc] sm:$0xf]
    %v20 = vld [vmem:[%s0 + $0x10] sm:$0xf]
    %v21 = vld [vmem:[%s0 + $0x14] sm:$0xf]
    %v22 = vld [vmem:[%s0 + $0x18] sm:$0xf]
    %v23 = vld [vmem:[%s0 + $0x1c] sm:$0xf]
    %v24 = vld [vmem:[%s0 + $0x20] sm:$0xf]
    %v25 = vld [vmem:[%s0 + $0x24] sm:$0xf]
    %v26 = vld [vmem:[%s0 + $0x28] sm:$0xf]
    %v27 = vld [vmem:[%s0 + $0x2c] sm:$0xf]
    %v28 = vld [vmem:[%s0 + $0x30] sm:$0xf]
    %v29 = vld [vmem:[%s0 + $0x34] sm:$0xf]
    %v30 = vld [vmem:[%s0 + $0x38] sm:$0xf]
    %v31 = vld [vmem:[%s0 + $0x3c] sm:$0xf]
    %v32 = vld [vmem:[%s0 + $0x40] sm:$0xf]
    %v33 = vld [vmem:[%s0 + $0x44] sm:$0xf]
    %v34 = vld [vmem:[%s0 + $0x48] sm:$0xf]
    %v35 = vld [vmem:[%s0 + $0x4c] sm:$0xf]
    %v36 = vld [vmem:[%s0 + $0x50] sm:$0xf]
    %v37 = vld [vmem:[%s0 + $0x54] sm:$0xf]
    %v38 = vld [vmem:[%s0 + $0x58] sm:$0xf]
    %v39 = vld [vmem:[%s0 + $0x5c] sm:$0xf]
    %v40 = vld [vmem:[%s0 + $0x60] sm:$0xf]
    %v41 = vld [vmem:[%s0 + $0x64] sm:$0xf]
    %v42 = vld [vmem:[%s0 + $0x68] sm:$0xf]
    %v43 = vld [vmem:[%s0 + $0x6c] sm:$0xf]
    %v44 = vld [vmem:[%s0 + $0x70] sm:$0xf]
    %v45 = vld [vmem:[%s0 + $0x74] sm:$0xf]
    %v46 = vld [vmem:[%s0 + $0x78] sm:$0xf]
    %v47 = vld [vmem:[%s0 + $0x7c] sm:$0xf]
    %v48 = vld [vmem:[%s0 + $0x80] sm:$0xf]
    %v49 = vld [vmem:[%s0 + $0x84] sm:$0xf]
    %v50 = vld [vmem:[%s0 + $0x88] sm:$0xf]
    %v51 = vld [vmem:[%s0 + $0x8c] sm:$0xf]
    %v52 = vld [vmem:[%s0 + $0x90] sm:$0xf]
    %v53 = vld [vmem:[%s0 + $0x94] sm:$0xf]
    %v54 = vld [vmem:[%s0 + $0x98] sm:$0xf]
    %v55 = vld [vmem:[%s0 + $0x9c] sm:$0xf]
    %v56 = vld [vmem:[%s0 + $0xa0] sm:$0xf]
    %v57 = vld [vmem:[%s0 + $0xa4] sm:$0xf]
    %v58 = vld [vmem:[%s0 + $0xa8] sm:$0xf]
    %v59 = vld [vmem:[%s0 + $0xac] sm:$0xf]
    %v60 = vld [vmem:[%s0 + $0xb0] sm:$0xf]
    %v61 = vld [vmem:[%s0 + $0xb4] sm:$0xf]
    %v62 = vld [vmem:[%s0 + $0xb8] sm:$0xf]
    %v63 = vld [vmem:[%s0 + $0xbc] sm:$0xf]
    %v64 = vld [vmem:[%s0 + $0xc0] sm:$0xf]
    %v65 = vld [vmem:[%s0 + $0xc4] sm:$0xf]
    %v66 = vld [vmem:[%s0 + $0xc8] sm:$0xf]
    %v67 = vld [vmem:[%s0 + $0xcc] sm:$0xf]
    %v68 = vld [vmem:[%s0 + $0xd0] sm:$0xf]
    %v69 = vld [vmem:[%s0 + $0xd4] sm:$0xf]
    %v70 = vld [vmem:[%s0 + $0xd8] sm:$0xf]
    %v71 = vld [vmem:[%s0 + $0xdc] sm:$0xf]
    %v72 = vld [vmem:[%s0 + $0xe0] sm:$0xf]
    %v73 = vld [vmem:[%s0 + $0xe4] sm:$0xf]
    %v74 = vld [vmem:[%s0 + $0xe8] sm:$0xf]
    %v75 = vld [vmem:[%s0 + $0xec] sm:$0xf]
    %v76 = vld [vmem:[%s0 + $0xf0] sm:$0xf]
    %v77 = vld [vmem:[%s0 + $0xf4] sm:$0xf]
    %v78 = vld [vmem:[%s0 + $0xf8] sm:$0xf]
    %v79 = vld [vmem:[%s0 + $0xfc] sm:$0xf]
    %v80 = vld [vmem:[%s1] sm:$0xf]
    %v81 = vld [vmem:[%s1 + $0x4] sm:$0xf]
    %v82 = vld [vmem:[%s1 + $0x8] sm:$0xf]
    %v83 = vld [vmem:[%s1 + $0xc] sm:$0xf]
    %v84 = vld [vmem:[%s1 + $0x10] sm:$0x3]
    %v149 = vunpack.c.l.b16 %v16
    %v150 = vunpack.c.l.b16 %v17
    %v151 = vunpack.c.l.b16 %v18
    %v152 = vunpack.c.l.b16 %v19
    %v153 = vunpack.c.l.b16 %v20
    %v154 = vunpack.c.l.b16 %v21
    %v155 = vunpack.c.l.b16 %v22
    %v156 = vunpack.c.l.b16 %v23
    %v157 = vunpack.c.l.b16 %v24
    %v158 = vunpack.c.l.b16 %v25
    %v159 = vunpack.c.l.b16 %v26
    %v160 = vunpack.c.l.b16 %v27
    %v161 = vunpack.c.l.b16 %v28
    %v162 = vunpack.c.l.b16 %v29
    %v163 = vunpack.c.l.b16 %v30
    %v164 = vunpack.c.l.b16 %v31
    %v165 = vunpack.c.l.b16 %v32
    %v166 = vunpack.c.l.b16 %v33
    %v167 = vunpack.c.l.b16 %v34
    %v168 = vunpack.c.l.b16 %v35
    %v169 = vunpack.c.l.b16 %v36
    %v170 = vunpack.c.l.b16 %v37
    %v171 = vunpack.c.l.b16 %v38
    %v172 = vunpack.c.l.b16 %v39
    %v173 = vunpack.c.l.b16 %v40
    %v174 = vunpack.c.l.b16 %v41
    %v175 = vunpack.c.l.b16 %v42
    %v176 = vunpack.c.l.b16 %v43
    %v177 = vunpack.c.l.b16 %v44
    %v178 = vunpack.c.l.b16 %v45
    %v179 = vunpack.c.l.b16 %v46
    %v180 = vunpack.c.l.b16 %v47
    %v181 = vunpack.c.l.b16 %v48
    %v182 = vunpack.c.l.b16 %v49
    %v183 = vunpack.c.l.b16 %v50
    %v184 = vunpack.c.l.b16 %v51
    %v185 = vunpack.c.l.b16 %v52
    %v186 = vunpack.c.l.b16 %v53
    %v187 = vunpack.c.l.b16 %v54
    %v188 = vunpack.c.l.b16 %v55
    %v189 = vunpack.c.l.b16 %v56
    %v190 = vunpack.c.l.b16 %v57
    %v191 = vunpack.c.l.b16 %v58
    %v192 = vunpack.c.l.b16 %v59
    %v193 = vunpack.c.l.b16 %v60
    %v194 = vunpack.c.l.b16 %v61
    %v195 = vunpack.c.l.b16 %v62
    %v196 = vunpack.c.l.b16 %v63
    %v197 = vunpack.c.l.b16 %v64
    %v198 = vunpack.c.l.b16 %v65
    %v199 = vunpack.c.l.b16 %v66
    %v200 = vunpack.c.l.b16 %v67
    %v201 = vunpack.c.l.b16 %v68
    %v202 = vunpack.c.l.b16 %v69
    %v203 = vunpack.c.l.b16 %v70
    %v204 = vunpack.c.l.b16 %v71
    %v205 = vunpack.c.l.b16 %v72
    %v206 = vunpack.c.l.b16 %v73
    %v207 = vunpack.c.l.b16 %v74
    %v208 = vunpack.c.l.b16 %v75
    %v209 = vunpack.c.l.b16 %v76
    %v210 = vunpack.c.l.b16 %v77
    %v211 = vunpack.c.l.b16 %v78
    %v212 = vunpack.c.l.b16 %v79
    %v213 = vpack.c.b16 %v150, %v149
    %v214 = vpack.c.b16 %v152, %v151
    %v215 = vpack.c.b16 %v154, %v153
    %v216 = vpack.c.b16 %v156, %v155
    %v217 = vpack.c.b16 %v158, %v157
    %v218 = vpack.c.b16 %v160, %v159
    %v219 = vpack.c.b16 %v162, %v161
    %v220 = vpack.c.b16 %v164, %v163
    %v221 = vpack.c.b16 %v166, %v165
    %v222 = vpack.c.b16 %v168, %v167
    %v223 = vpack.c.b16 %v170, %v169
    %v224 = vpack.c.b16 %v172, %v171
    %v225 = vpack.c.b16 %v174, %v173
    %v226 = vpack.c.b16 %v176, %v175
    %v227 = vpack.c.b16 %v178, %v177
    %v228 = vpack.c.b16 %v180, %v179
    %v229 = vpack.c.b16 %v182, %v181
    %v230 = vpack.c.b16 %v184, %v183
    %v231 = vpack.c.b16 %v186, %v185
    %v232 = vpack.c.b16 %v188, %v187
    %v233 = vpack.c.b16 %v190, %v189
    %v234 = vpack.c.b16 %v192, %v191
    %v235 = vpack.c.b16 %v194, %v193
    %v236 = vpack.c.b16 %v196, %v195
    %v237 = vpack.c.b16 %v198, %v197
    %v238 = vpack.c.b16 %v200, %v199
    %v239 = vpack.c.b16 %v202, %v201
    %v240 = vpack.c.b16 %v204, %v203
    %v241 = vpack.c.b16 %v206, %v205
    %v242 = vpack.c.b16 %v208, %v207
    %v243 = vpack.c.b16 %v210, %v209
    %v244 = vpack.c.b16 %v212, %v211
    %v250 = vunpack.c.l.b16 %v80
    %v251 = vunpack.c.l.b16 %v81
    %v252 = vunpack.c.l.b16 %v82
    %v253 = vunpack.c.l.b16 %v83
    %v254 = vunpack.c.l.b16 %v84
    %v255 = vpack.c.b16 %v251, %v250
    %v256 = vpack.c.b16 %v253, %v252
    %v257 = vpack.c.b16 %v254, %v254
    %vm260 = vcmask 293888
    %v262 = vsel %vm260, %v213, 0
    %v265 = vsel %vm260, %v214, 0
    %v268 = vsel %vm260, %v215, 0
    %v271 = vsel %vm260, %v216, 0
    %v274 = vsel %vm260, %v217, 0
    %v277 = vsel %vm260, %v218, 0
    %v280 = vsel %vm260, %v219, 0
    %v283 = vsel %vm260, %v220, 0
    %v286 = vsel %vm260, %v221, 0
    %v289 = vsel %vm260, %v222, 0
    %v292 = vsel %vm260, %v223, 0
    %v295 = vsel %vm260, %v224, 0
    %v298 = vsel %vm260, %v225, 0
    %v301 = vsel %vm260, %v226, 0
    %v304 = vsel %vm260, %v227, 0
    %v307 = vsel %vm260, %v228, 0
    %v310 = vsel %vm260, %v229, 0
    %v313 = vsel %vm260, %v230, 0
    %v316 = vsel %vm260, %v231, 0
    %v319 = vsel %vm260, %v232, 0
    %v322 = vsel %vm260, %v233, 0
    %v325 = vsel %vm260, %v234, 0
    %v328 = vsel %vm260, %v235, 0
    %v331 = vsel %vm260, %v236, 0
    %v334 = vsel %vm260, %v237, 0
    %v337 = vsel %vm260, %v238, 0
    %v340 = vsel %vm260, %v239, 0
    %v343 = vsel %vm260, %v240, 0
    %v346 = vsel %vm260, %v241, 0
    %v349 = vsel %vm260, %v242, 0
    %v352 = vsel %vm260, %v243, 0
    %v355 = vsel %vm260, %v244, 0
    %vm357 = vcmask 1041408
    %v359 = vsel %vm357, %v257, 0
    %361 = vmatprep.subr.bf16.mxu0 0
    %362 = vmatpush1.bf16.msra.mxu0 0
    %363 = vmatprep.subr.bf16.mxu0 0
    %364 = vmatpush1.bf16.msra.mxu0 0
    %365 = vmatprep.subr.bf16.mxu0 0
    %366 = vmatpush1.bf16.msra.mxu0 0
    %367 = vmatprep.subr.bf16.mxu0 0
    %368 = vmatpush1.bf16.msra.mxu0 0
    %369 = vmatprep.subr.bf16.mxu0 0
    %370 = vmatpush1.bf16.msra.mxu0 0
    %371 = vmatprep.subr.bf16.mxu0 0
    %372 = vmatpush1.bf16.msra.mxu0 %v359
    %373 = vmatprep.subr.bf16.mxu0 0
    %374 = vmatpush1.bf16.msra.mxu0 %v256
    %375 = vmatprep.subr.bf16.mxu0 0
    %376 = vmatpush1.bf16.msra.mxu0 %v255
    %377 = vmatprep.subr.bf16.mxu0 0
    %378 = vmatpush2.bf16.msra.mxu0 0
    %379 = vmatprep.subr.bf16.mxu0 0
    %380 = vmatpush2.bf16.msra.mxu0 0
    %381 = vmatprep.subr.bf16.mxu0 0
    %382 = vmatpush2.bf16.msra.mxu0 0
    %383 = vmatprep.subr.bf16.mxu0 0
    %384 = vmatpush2.bf16.msra.mxu0 0
    %385 = vmatprep.subr.bf16.mxu0 0
    %386 = vmatpush2.bf16.msra.mxu0 0
    %387 = vmatprep.subr.bf16.mxu0 0
    %388 = vmatpush2.bf16.msra.mxu0 0
    %389 = vmatprep.subr.bf16.mxu0 0
    %390 = vmatpush2.bf16.msra.mxu0 0
    %391 = vmatprep.subr.bf16.mxu0 0
    %392 = vmatpush2.bf16.msra.mxu0 0
    %393 = vmatprep.mubr.bf16.mxu0 0
    %394 = vmatmul.mubr.bf16.gmra.mxu0 %v262
    %v395 = vpop.f32.mrf.mxu0
    %v396 = vadd.f32 0.0, %v395
    %v397 = vpop.f32.mrf.mxu0
    %v398 = vpop.f32.mrf.mxu0
    %v399 = vadd.f32 0.0, %v398
    %v400 = vpop.f32.mrf.mxu0
    %401 = vmatprep.mubr.bf16.mxu0 0
    %402 = vmatmul.mubr.bf16.gmra.mxu0 %v265
    %v403 = vpop.f32.mrf.mxu0
    %v404 = vadd.f32 0.0, %v403
    %v405 = vpop.f32.mrf.mxu0
    %v406 = vpop.f32.mrf.mxu0
    %v407 = vadd.f32 0.0, %v406
    %v408 = vpop.f32.mrf.mxu0
    %409 = vmatprep.mubr.bf16.mxu0 0
    %410 = vmatmul.mubr.bf16.gmra.mxu0 %v268
    %v411 = vpop.f32.mrf.mxu0
    %v412 = vadd.f32 0.0, %v411
    %v413 = vpop.f32.mrf.mxu0
    %v414 = vpop.f32.mrf.mxu0
    %v415 = vadd.f32 0.0, %v414
    %v416 = vpop.f32.mrf.mxu0
    %417 = vmatprep.mubr.bf16.mxu0 0
    %418 = vmatmul.mubr.bf16.gmra.mxu0 %v271
    %v419 = vpop.f32.mrf.mxu0
    %v420 = vadd.f32 0.0, %v419
    %v421 = vpop.f32.mrf.mxu0
    %v422 = vpop.f32.mrf.mxu0
    %v423 = vadd.f32 0.0, %v422
    %v424 = vpop.f32.mrf.mxu0
    %425 = vmatprep.mubr.bf16.mxu0 0
    %426 = vmatmul.mubr.bf16.gmra.mxu0 %v274
    %v427 = vpop.f32.mrf.mxu0
    %v428 = vadd.f32 0.0, %v427
    %v429 = vpop.f32.mrf.mxu0
    %v430 = vpop.f32.mrf.mxu0
    %v431 = vadd.f32 0.0, %v430
    %v432 = vpop.f32.mrf.mxu0
    %433 = vmatprep.mubr.bf16.mxu0 0
    %434 = vmatmul.mubr.bf16.gmra.mxu0 %v277
    %v435 = vpop.f32.mrf.mxu0
    %v436 = vadd.f32 0.0, %v435
    %v437 = vpop.f32.mrf.mxu0
    %v438 = vpop.f32.mrf.mxu0
    %v439 = vadd.f32 0.0, %v438
    %v440 = vpop.f32.mrf.mxu0
    %441 = vmatprep.mubr.bf16.mxu0 0
    %442 = vmatmul.mubr.bf16.gmra.mxu0 %v280
    %v443 = vpop.f32.mrf.mxu0
    %v444 = vadd.f32 0.0, %v443
    %v445 = vpop.f32.mrf.mxu0
    %v446 = vpop.f32.mrf.mxu0
    %v447 = vadd.f32 0.0, %v446
    %v448 = vpop.f32.mrf.mxu0
    %449 = vmatprep.mubr.bf16.mxu0 0
    %450 = vmatmul.mubr.bf16.gmra.mxu0 %v283
    %v451 = vpop.f32.mrf.mxu0
    %v452 = vadd.f32 0.0, %v451
    %v453 = vpop.f32.mrf.mxu0
    %v454 = vpop.f32.mrf.mxu0
    %v455 = vadd.f32 0.0, %v454
    %v456 = vpop.f32.mrf.mxu0
    %457 = vmatprep.mubr.bf16.mxu0 0
    %458 = vmatmul.mubr.bf16.gmra.mxu0 %v286
    %v459 = vpop.f32.mrf.mxu0
    %v460 = vadd.f32 0.0, %v459
    %v461 = vpop.f32.mrf.mxu0
    %v462 = vpop.f32.mrf.mxu0
    %v463 = vadd.f32 0.0, %v462
    %v464 = vpop.f32.mrf.mxu0
    %465 = vmatprep.mubr.bf16.mxu0 0
    %466 = vmatmul.mubr.bf16.gmra.mxu0 %v289
    %v467 = vpop.f32.mrf.mxu0
    %v468 = vadd.f32 0.0, %v467
    %v469 = vpop.f32.mrf.mxu0
    %v470 = vpop.f32.mrf.mxu0
    %v471 = vadd.f32 0.0, %v470
    %v472 = vpop.f32.mrf.mxu0
    %473 = vmatprep.mubr.bf16.mxu0 0
    %474 = vmatmul.mubr.bf16.gmra.mxu0 %v292
    %v475 = vpop.f32.mrf.mxu0
    %v476 = vadd.f32 0.0, %v475
    %v477 = vpop.f32.mrf.mxu0
    %v478 = vpop.f32.mrf.mxu0
    %v479 = vadd.f32 0.0, %v478
    %v480 = vpop.f32.mrf.mxu0
    %481 = vmatprep.mubr.bf16.mxu0 0
    %482 = vmatmul.mubr.bf16.gmra.mxu0 %v295
    %v483 = vpop.f32.mrf.mxu0
    %v484 = vadd.f32 0.0, %v483
    %v485 = vpop.f32.mrf.mxu0
    %v486 = vpop.f32.mrf.mxu0
    %v487 = vadd.f32 0.0, %v486
    %v488 = vpop.f32.mrf.mxu0
    %489 = vmatprep.mubr.bf16.mxu0 0
    %490 = vmatmul.mubr.bf16.gmra.mxu0 %v298
    %v491 = vpop.f32.mrf.mxu0
    %v492 = vadd.f32 0.0, %v491
    %v493 = vpop.f32.mrf.mxu0
    %v494 = vpop.f32.mrf.mxu0
    %v495 = vadd.f32 0.0, %v494
    %v496 = vpop.f32.mrf.mxu0
    %497 = vmatprep.mubr.bf16.mxu0 0
    %498 = vmatmul.mubr.bf16.gmra.mxu0 %v301
    %v499 = vpop.f32.mrf.mxu0
    %v500 = vadd.f32 0.0, %v499
    %v501 = vpop.f32.mrf.mxu0
    %v502 = vpop.f32.mrf.mxu0
    %v503 = vadd.f32 0.0, %v502
    %v504 = vpop.f32.mrf.mxu0
    %505 = vmatprep.mubr.bf16.mxu0 0
    %506 = vmatmul.mubr.bf16.gmra.mxu0 %v304
    %v507 = vpop.f32.mrf.mxu0
    %v508 = vadd.f32 0.0, %v507
    %v509 = vpop.f32.mrf.mxu0
    %v510 = vpop.f32.mrf.mxu0
    %v511 = vadd.f32 0.0, %v510
    %v512 = vpop.f32.mrf.mxu0
    %513 = vmatprep.mubr.bf16.mxu0 0
    %514 = vmatmul.mubr.bf16.gmra.mxu0 %v307
    %v515 = vpop.f32.mrf.mxu0
    %v516 = vadd.f32 0.0, %v515
    %v517 = vpop.f32.mrf.mxu0
    %v518 = vpop.f32.mrf.mxu0
    %v519 = vadd.f32 0.0, %v518
    %v520 = vpop.f32.mrf.mxu0
    %521 = vmatprep.mubr.bf16.mxu0 0
    %522 = vmatmul.mubr.bf16.gmra.mxu0 %v310
    %v523 = vpop.f32.mrf.mxu0
    %v524 = vadd.f32 0.0, %v523
    %v525 = vpop.f32.mrf.mxu0
    %v526 = vpop.f32.mrf.mxu0
    %v527 = vadd.f32 0.0, %v526
    %v528 = vpop.f32.mrf.mxu0
    %529 = vmatprep.mubr.bf16.mxu0 0
    %530 = vmatmul.mubr.bf16.gmra.mxu0 %v313
    %v531 = vpop.f32.mrf.mxu0
    %v532 = vadd.f32 0.0, %v531
    %v533 = vpop.f32.mrf.mxu0
    %v534 = vpop.f32.mrf.mxu0
    %v535 = vadd.f32 0.0, %v534
    %v536 = vpop.f32.mrf.mxu0
    %537 = vmatprep.mubr.bf16.mxu0 0
    %538 = vmatmul.mubr.bf16.gmra.mxu0 %v316
    %v539 = vpop.f32.mrf.mxu0
    %v540 = vadd.f32 0.0, %v539
    %v541 = vpop.f32.mrf.mxu0
    %v542 = vpop.f32.mrf.mxu0
    %v543 = vadd.f32 0.0, %v542
    %v544 = vpop.f32.mrf.mxu0
    %545 = vmatprep.mubr.bf16.mxu0 0
    %546 = vmatmul.mubr.bf16.gmra.mxu0 %v319
    %v547 = vpop.f32.mrf.mxu0
    %v548 = vadd.f32 0.0, %v547
    %v549 = vpop.f32.mrf.mxu0
    %v550 = vpop.f32.mrf.mxu0
    %v551 = vadd.f32 0.0, %v550
    %v552 = vpop.f32.mrf.mxu0
    %553 = vmatprep.mubr.bf16.mxu0 0
    %554 = vmatmul.mubr.bf16.gmra.mxu0 %v322
    %v555 = vpop.f32.mrf.mxu0
    %v556 = vadd.f32 0.0, %v555
    %v557 = vpop.f32.mrf.mxu0
    %v558 = vpop.f32.mrf.mxu0
    %v559 = vadd.f32 0.0, %v558
    %v560 = vpop.f32.mrf.mxu0
    %561 = vmatprep.mubr.bf16.mxu0 0
    %562 = vmatmul.mubr.bf16.gmra.mxu0 %v325
    %v563 = vpop.f32.mrf.mxu0
    %v564 = vadd.f32 0.0, %v563
    %v565 = vpop.f32.mrf.mxu0
    %v566 = vpop.f32.mrf.mxu0
    %v567 = vadd.f32 0.0, %v566
    %v568 = vpop.f32.mrf.mxu0
    %569 = vmatprep.mubr.bf16.mxu0 0
    %570 = vmatmul.mubr.bf16.gmra.mxu0 %v328
    %v571 = vpop.f32.mrf.mxu0
    %v572 = vadd.f32 0.0, %v571
    %v573 = vpop.f32.mrf.mxu0
    %v574 = vpop.f32.mrf.mxu0
    %v575 = vadd.f32 0.0, %v574
    %v576 = vpop.f32.mrf.mxu0
    %577 = vmatprep.mubr.bf16.mxu0 0
    %578 = vmatmul.mubr.bf16.gmra.mxu0 %v331
    %v579 = vpop.f32.mrf.mxu0
    %v580 = vadd.f32 0.0, %v579
    %v581 = vpop.f32.mrf.mxu0
    %v582 = vpop.f32.mrf.mxu0
    %v583 = vadd.f32 0.0, %v582
    %v584 = vpop.f32.mrf.mxu0
    %585 = vmatprep.mubr.bf16.mxu0 0
    %586 = vmatmul.mubr.bf16.gmra.mxu0 %v334
    %v587 = vpop.f32.mrf.mxu0
    %v588 = vadd.f32 0.0, %v587
    %v589 = vpop.f32.mrf.mxu0
    %v590 = vpop.f32.mrf.mxu0
    %v591 = vadd.f32 0.0, %v590
    %v592 = vpop.f32.mrf.mxu0
    %593 = vmatprep.mubr.bf16.mxu0 0
    %594 = vmatmul.mubr.bf16.gmra.mxu0 %v337
    %v595 = vpop.f32.mrf.mxu0
    %v596 = vadd.f32 0.0, %v595
    %v597 = vpop.f32.mrf.mxu0
    %v598 = vpop.f32.mrf.mxu0
    %v599 = vadd.f32 0.0, %v598
    %v600 = vpop.f32.mrf.mxu0
    %601 = vmatprep.mubr.bf16.mxu0 0
    %602 = vmatmul.mubr.bf16.gmra.mxu0 %v340
    %v603 = vpop.f32.mrf.mxu0
    %v604 = vadd.f32 0.0, %v603
    %v605 = vpop.f32.mrf.mxu0
    %v606 = vpop.f32.mrf.mxu0
    %v607 = vadd.f32 0.0, %v606
    %v608 = vpop.f32.mrf.mxu0
    %609 = vmatprep.mubr.bf16.mxu0 0
    %610 = vmatmul.mubr.bf16.gmra.mxu0 %v343
    %v611 = vpop.f32.mrf.mxu0
    %v612 = vadd.f32 0.0, %v611
    %v613 = vpop.f32.mrf.mxu0
    %v614 = vpop.f32.mrf.mxu0
    %v615 = vadd.f32 0.0, %v614
    %v616 = vpop.f32.mrf.mxu0
    %617 = vmatprep.mubr.bf16.mxu0 0
    %618 = vmatmul.mubr.bf16.gmra.mxu0 %v346
    %v619 = vpop.f32.mrf.mxu0
    %v620 = vadd.f32 0.0, %v619
    %v621 = vpop.f32.mrf.mxu0
    %v622 = vpop.f32.mrf.mxu0
    %v623 = vadd.f32 0.0, %v622
    %v624 = vpop.f32.mrf.mxu0
    %625 = vmatprep.mubr.bf16.mxu0 0
    %626 = vmatmul.mubr.bf16.gmra.mxu0 %v349
    %v627 = vpop.f32.mrf.mxu0
    %v628 = vadd.f32 0.0, %v627
    %v629 = vpop.f32.mrf.mxu0
    %v630 = vpop.f32.mrf.mxu0
    %v631 = vadd.f32 0.0, %v630
    %v632 = vpop.f32.mrf.mxu0
    %633 = vmatprep.mubr.bf16.mxu0 0
    %634 = vmatmul.mubr.bf16.gmra.mxu0 %v352
    %v635 = vpop.f32.mrf.mxu0
    %v636 = vadd.f32 0.0, %v635
    %v637 = vpop.f32.mrf.mxu0
    %v638 = vpop.f32.mrf.mxu0
    %v639 = vadd.f32 0.0, %v638
    %v640 = vpop.f32.mrf.mxu0
    %641 = vmatprep.mubr.bf16.mxu0 0
    %642 = vmatmul.mubr.bf16.gmra.mxu0 %v355
    %v643 = vpop.f32.mrf.mxu0
    %v644 = vadd.f32 0.0, %v643
    %v645 = vpop.f32.mrf.mxu0
    %v646 = vpop.f32.mrf.mxu0
    %v647 = vadd.f32 0.0, %v646
    %v648 = vpop.f32.mrf.mxu0
    %649 = vdwg.mxu0
    %v650 = vpack.c.bf16 %v399, %v396
    %v651 = vpack.c.bf16 %v407, %v404
    %v652 = vpack.c.bf16 %v415, %v412
    %v653 = vpack.c.bf16 %v423, %v420
    %v654 = vpack.c.bf16 %v431, %v428
    %v655 = vpack.c.bf16 %v439, %v436
    %v656 = vpack.c.bf16 %v447, %v444
    %v657 = vpack.c.bf16 %v455, %v452
    %v658 = vpack.c.bf16 %v463, %v460
    %v659 = vpack.c.bf16 %v471, %v468
    %v660 = vpack.c.bf16 %v479, %v476
    %v661 = vpack.c.bf16 %v487, %v484
    %v662 = vpack.c.bf16 %v495, %v492
    %v663 = vpack.c.bf16 %v503, %v500
    %v664 = vpack.c.bf16 %v511, %v508
    %v665 = vpack.c.bf16 %v519, %v516
    %v666 = vpack.c.bf16 %v527, %v524
    %v667 = vpack.c.bf16 %v535, %v532
    %v668 = vpack.c.bf16 %v543, %v540
    %v669 = vpack.c.bf16 %v551, %v548
    %v670 = vpack.c.bf16 %v559, %v556
    %v671 = vpack.c.bf16 %v567, %v564
    %v672 = vpack.c.bf16 %v575, %v572
    %v673 = vpack.c.bf16 %v583, %v580
    %v674 = vpack.c.bf16 %v591, %v588
    %v675 = vpack.c.bf16 %v599, %v596
    %v676 = vpack.c.bf16 %v607, %v604
    %v677 = vpack.c.bf16 %v615, %v612
    %v678 = vpack.c.bf16 %v623, %v620
    %v679 = vpack.c.bf16 %v631, %v628
    %v680 = vpack.c.bf16 %v639, %v636
    %v681 = vpack.c.bf16 %v647, %v644
    %v714 = vunpack.c.l.b16 %v650
    %v715 = vunpack.c.h.b16 %v650
    %v716 = vunpack.c.l.b16 %v651
    %v717 = vunpack.c.h.b16 %v651
    %v718 = vunpack.c.l.b16 %v652
    %v719 = vunpack.c.h.b16 %v652
    %v720 = vunpack.c.l.b16 %v653
    %v721 = vunpack.c.h.b16 %v653
    %v722 = vunpack.c.l.b16 %v654
    %v723 = vunpack.c.h.b16 %v654
    %v724 = vunpack.c.l.b16 %v655
    %v725 = vunpack.c.h.b16 %v655
    %v726 = vunpack.c.l.b16 %v656
    %v727 = vunpack.c.h.b16 %v656
    %v728 = vunpack.c.l.b16 %v657
    %v729 = vunpack.c.h.b16 %v657
    %v730 = vunpack.c.l.b16 %v658
    %v731 = vunpack.c.h.b16 %v658
    %v732 = vunpack.c.l.b16 %v659
    %v733 = vunpack.c.h.b16 %v659
    %v734 = vunpack.c.l.b16 %v660
    %v735 = vunpack.c.h.b16 %v660
    %v736 = vunpack.c.l.b16 %v661
    %v737 = vunpack.c.h.b16 %v661
    %v738 = vunpack.c.l.b16 %v662
    %v739 = vunpack.c.h.b16 %v662
    %v740 = vunpack.c.l.b16 %v663
    %v741 = vunpack.c.h.b16 %v663
    %v742 = vunpack.c.l.b16 %v664
    %v743 = vunpack.c.h.b16 %v664
    %v744 = vunpack.c.l.b16 %v665
    %v745 = vunpack.c.h.b16 %v665
    %v746 = vunpack.c.l.b16 %v666
    %v747 = vunpack.c.h.b16 %v666
    %v748 = vunpack.c.l.b16 %v667
    %v749 = vunpack.c.h.b16 %v667
    %v750 = vunpack.c.l.b16 %v668
    %v751 = vunpack.c.h.b16 %v668
    %v752 = vunpack.c.l.b16 %v669
    %v753 = vunpack.c.h.b16 %v669
    %v754 = vunpack.c.l.b16 %v670
    %v755 = vunpack.c.h.b16 %v670
    %v756 = vunpack.c.l.b16 %v671
    %v757 = vunpack.c.h.b16 %v671
    %v758 = vunpack.c.l.b16 %v672
    %v759 = vunpack.c.h.b16 %v672
    %v760 = vunpack.c.l.b16 %v673
    %v761 = vunpack.c.h.b16 %v673
    %v762 = vunpack.c.l.b16 %v674
    %v763 = vunpack.c.h.b16 %v674
    %v764 = vunpack.c.l.b16 %v675
    %v765 = vunpack.c.h.b16 %v675
    %v766 = vunpack.c.l.b16 %v676
    %v767 = vunpack.c.h.b16 %v676
    %v768 = vunpack.c.l.b16 %v677
    %v769 = vunpack.c.h.b16 %v677
    %v770 = vunpack.c.l.b16 %v678
    %v771 = vunpack.c.h.b16 %v678
    %v772 = vunpack.c.l.b16 %v679
    %v773 = vunpack.c.h.b16 %v679
    %v774 = vunpack.c.l.b16 %v680
    %v775 = vunpack.c.h.b16 %v680
    %v776 = vunpack.c.l.b16 %v681
    %v777 = vunpack.c.h.b16 %v681
    %v778 = vpack.c.b16 %v714, %v714
    %v779 = vpack.c.b16 %v715, %v715
    %v780 = vpack.c.b16 %v716, %v716
    %v781 = vpack.c.b16 %v717, %v717
    %v782 = vpack.c.b16 %v718, %v718
    %v783 = vpack.c.b16 %v719, %v719
    %v784 = vpack.c.b16 %v720, %v720
    %v785 = vpack.c.b16 %v721, %v721
    %v786 = vpack.c.b16 %v722, %v722
    %v787 = vpack.c.b16 %v723, %v723
    %v788 = vpack.c.b16 %v724, %v724
    %v789 = vpack.c.b16 %v725, %v725
    %v790 = vpack.c.b16 %v726, %v726
    %v791 = vpack.c.b16 %v727, %v727
    %v792 = vpack.c.b16 %v728, %v728
    %v793 = vpack.c.b16 %v729, %v729
    %v794 = vpack.c.b16 %v730, %v730
    %v795 = vpack.c.b16 %v731, %v731
    %v796 = vpack.c.b16 %v732, %v732
    %v797 = vpack.c.b16 %v733, %v733
    %v798 = vpack.c.b16 %v734, %v734
    %v799 = vpack.c.b16 %v735, %v735
    %v800 = vpack.c.b16 %v736, %v736
    %v801 = vpack.c.b16 %v737, %v737
    %v802 = vpack.c.b16 %v738, %v738
    %v803 = vpack.c.b16 %v739, %v739
    %v804 = vpack.c.b16 %v740, %v740
    %v805 = vpack.c.b16 %v741, %v741
    %v806 = vpack.c.b16 %v742, %v742
    %v807 = vpack.c.b16 %v743, %v743
    %v808 = vpack.c.b16 %v744, %v744
    %v809 = vpack.c.b16 %v745, %v745
    %v810 = vpack.c.b16 %v746, %v746
    %v811 = vpack.c.b16 %v747, %v747
    %v812 = vpack.c.b16 %v748, %v748
    %v813 = vpack.c.b16 %v749, %v749
    %v814 = vpack.c.b16 %v750, %v750
    %v815 = vpack.c.b16 %v751, %v751
    %v816 = vpack.c.b16 %v752, %v752
    %v817 = vpack.c.b16 %v753, %v753
    %v818 = vpack.c.b16 %v754, %v754
    %v819 = vpack.c.b16 %v755, %v755
    %v820 = vpack.c.b16 %v756, %v756
    %v821 = vpack.c.b16 %v757, %v757
    %v822 = vpack.c.b16 %v758, %v758
    %v823 = vpack.c.b16 %v759, %v759
    %v824 = vpack.c.b16 %v760, %v760
    %v825 = vpack.c.b16 %v761, %v761
    %v826 = vpack.c.b16 %v762, %v762
    %v827 = vpack.c.b16 %v763, %v763
    %v828 = vpack.c.b16 %v764, %v764
    %v829 = vpack.c.b16 %v765, %v765
    %v830 = vpack.c.b16 %v766, %v766
    %v831 = vpack.c.b16 %v767, %v767
    %v832 = vpack.c.b16 %v768, %v768
    %v833 = vpack.c.b16 %v769, %v769
    %v834 = vpack.c.b16 %v770, %v770
    %v835 = vpack.c.b16 %v771, %v771
    %v836 = vpack.c.b16 %v772, %v772
    %v837 = vpack.c.b16 %v773, %v773
    %v838 = vpack.c.b16 %v774, %v774
    %v839 = vpack.c.b16 %v775, %v775
    %v840 = vpack.c.b16 %v776, %v776
    %v841 = vpack.c.b16 %v777, %v777
    %906 = vst [vmem:[#allocation2] sm:$0xf] %v778
    %907 = vst [vmem:[#allocation2 + $0x4] sm:$0xf] %v779
    %908 = vst [vmem:[#allocation2 + $0x8] sm:$0xf] %v780
    %909 = vst [vmem:[#allocation2 + $0xc] sm:$0xf] %v781
    %910 = vst [vmem:[#allocation2 + $0x10] sm:$0xf] %v782
    %911 = vst [vmem:[#allocation2 + $0x14] sm:$0xf] %v783
    %912 = vst [vmem:[#allocation2 + $0x18] sm:$0xf] %v784
    %913 = vst [vmem:[#allocation2 + $0x1c] sm:$0xf] %v785
    %914 = vst [vmem:[#allocation2 + $0x20] sm:$0xf] %v786
    %915 = vst [vmem:[#allocation2 + $0x24] sm:$0xf] %v787
    %916 = vst [vmem:[#allocation2 + $0x28] sm:$0xf] %v788
    %917 = vst [vmem:[#allocation2 + $0x2c] sm:$0xf] %v789
    %918 = vst [vmem:[#allocation2 + $0x30] sm:$0xf] %v790
    %919 = vst [vmem:[#allocation2 + $0x34] sm:$0xf] %v791
    %920 = vst [vmem:[#allocation2 + $0x38] sm:$0xf] %v792
    %921 = vst [vmem:[#allocation2 + $0x3c] sm:$0xf] %v793
    %922 = vst [vmem:[#allocation2 + $0x40] sm:$0xf] %v794
    %923 = vst [vmem:[#allocation2 + $0x44] sm:$0xf] %v795
    %924 = vst [vmem:[#allocation2 + $0x48] sm:$0xf] %v796
    %925 = vst [vmem:[#allocation2 + $0x4c] sm:$0xf] %v797
    %926 = vst [vmem:[#allocation2 + $0x50] sm:$0xf] %v798
    %927 = vst [vmem:[#allocation2 + $0x54] sm:$0xf] %v799
    %928 = vst [vmem:[#allocation2 + $0x58] sm:$0xf] %v800
    %929 = vst [vmem:[#allocation2 + $0x5c] sm:$0xf] %v801
    %930 = vst [vmem:[#allocation2 + $0x60] sm:$0xf] %v802
    %931 = vst [vmem:[#allocation2 + $0x64] sm:$0xf] %v803
    %932 = vst [vmem:[#allocation2 + $0x68] sm:$0xf] %v804
    %933 = vst [vmem:[#allocation2 + $0x6c] sm:$0xf] %v805
    %934 = vst [vmem:[#allocation2 + $0x70] sm:$0xf] %v806
    %935 = vst [vmem:[#allocation2 + $0x74] sm:$0xf] %v807
    %936 = vst [vmem:[#allocation2 + $0x78] sm:$0xf] %v808
    %937 = vst [vmem:[#allocation2 + $0x7c] sm:$0xf] %v809
    %938 = vst [vmem:[#allocation2 + $0x80] sm:$0xf] %v810
    %939 = vst [vmem:[#allocation2 + $0x84] sm:$0xf] %v811
    %940 = vst [vmem:[#allocation2 + $0x88] sm:$0xf] %v812
    %941 = vst [vmem:[#allocation2 + $0x8c] sm:$0xf] %v813
    %942 = vst [vmem:[#allocation2 + $0x90] sm:$0xf] %v814
    %943 = vst [vmem:[#allocation2 + $0x94] sm:$0xf] %v815
    %944 = vst [vmem:[#allocation2 + $0x98] sm:$0xf] %v816
    %945 = vst [vmem:[#allocation2 + $0x9c] sm:$0xf] %v817
    %946 = vst [vmem:[#allocation2 + $0xa0] sm:$0xf] %v818
    %947 = vst [vmem:[#allocation2 + $0xa4] sm:$0xf] %v819
    %948 = vst [vmem:[#allocation2 + $0xa8] sm:$0xf] %v820
    %949 = vst [vmem:[#allocation2 + $0xac] sm:$0xf] %v821
    %950 = vst [vmem:[#allocation2 + $0xb0] sm:$0xf] %v822
    %951 = vst [vmem:[#allocation2 + $0xb4] sm:$0xf] %v823
    %952 = vst [vmem:[#allocation2 + $0xb8] sm:$0xf] %v824
    %953 = vst [vmem:[#allocation2 + $0xbc] sm:$0xf] %v825
    %954 = vst [vmem:[#allocation2 + $0xc0] sm:$0xf] %v826
    %955 = vst [vmem:[#allocation2 + $0xc4] sm:$0xf] %v827
    %956 = vst [vmem:[#allocation2 + $0xc8] sm:$0xf] %v828
    %957 = vst [vmem:[#allocation2 + $0xcc] sm:$0xf] %v829
    %958 = vst [vmem:[#allocation2 + $0xd0] sm:$0xf] %v830
    %959 = vst [vmem:[#allocation2 + $0xd4] sm:$0xf] %v831
    %960 = vst [vmem:[#allocation2 + $0xd8] sm:$0xf] %v832
    %961 = vst [vmem:[#allocation2 + $0xdc] sm:$0xf] %v833
    %962 = vst [vmem:[#allocation2 + $0xe0] sm:$0xf] %v834
    %963 = vst [vmem:[#allocation2 + $0xe4] sm:$0xf] %v835
    %964 = vst [vmem:[#allocation2 + $0xe8] sm:$0xf] %v836
    %965 = vst [vmem:[#allocation2 + $0xec] sm:$0xf] %v837
    %966 = vst [vmem:[#allocation2 + $0xf0] sm:$0xf] %v838
    %967 = vst [vmem:[#allocation2 + $0xf4] sm:$0xf] %v839
    %968 = vst [vmem:[#allocation2 + $0xf8] sm:$0xf] %v840
    %969 = vst [vmem:[#allocation2 + $0xfc] sm:$0xf] %v841
    %v970 = vadd.f32 %v396, %v399
    %v971 = vadd.f32 %v970, %v404
    %v972 = vadd.f32 %v971, %v407
    %v973 = vadd.f32 %v972, %v412
    %v974 = vadd.f32 %v973, %v415
    %v975 = vadd.f32 %v974, %v420
    %v976 = vadd.f32 %v975, %v423
    %v977 = vadd.f32 %v976, %v428
    %v978 = vadd.f32 %v977, %v431
    %v979 = vadd.f32 %v978, %v436
    %v980 = vadd.f32 %v979, %v439
    %v981 = vadd.f32 %v980, %v444
    %v982 = vadd.f32 %v981, %v447
    %v983 = vadd.f32 %v982, %v452
    %v984 = vadd.f32 %v983, %v455
    %v985 = vadd.f32 %v984, %v460
    %v986 = vadd.f32 %v985, %v463
    %v987 = vadd.f32 %v986, %v468
    %v988 = vadd.f32 %v987, %v471
    %v989 = vadd.f32 %v988, %v476
    %v990 = vadd.f32 %v989, %v479
    %v991 = vadd.f32 %v990, %v484
    %v992 = vadd.f32 %v991, %v487
    %v993 = vadd.f32 %v992, %v492
    %v994 = vadd.f32 %v993, %v495
    %v995 = vadd.f32 %v994, %v500
    %v996 = vadd.f32 %v995, %v503
    %v997 = vadd.f32 %v996, %v508
    %v998 = vadd.f32 %v997, %v511
    %v999 = vadd.f32 %v998, %v516
    %v1000 = vadd.f32 %v999, %v519
    %v1001 = vadd.f32 %v1000, %v524
    %v1002 = vadd.f32 %v1001, %v527
    %v1003 = vadd.f32 %v1002, %v532
    %v1004 = vadd.f32 %v1003, %v535
    %v1005 = vadd.f32 %v1004, %v540
    %v1006 = vadd.f32 %v1005, %v543
    %v1007 = vadd.f32 %v1006, %v548
    %v1008 = vadd.f32 %v1007, %v551
    %v1009 = vadd.f32 %v1008, %v556
    %v1010 = vadd.f32 %v1009, %v559
    %v1011 = vadd.f32 %v1010, %v564
    %v1012 = vadd.f32 %v1011, %v567
    %v1013 = vadd.f32 %v1012, %v572
    %v1014 = vadd.f32 %v1013, %v575
    %v1015 = vadd.f32 %v1014, %v580
    %v1016 = vadd.f32 %v1015, %v583
    %v1017 = vadd.f32 %v1016, %v588
    %v1018 = vadd.f32 %v1017, %v591
    %v1019 = vadd.f32 %v1018, %v596
    %v1020 = vadd.f32 %v1019, %v599
    %v1021 = vadd.f32 %v1020, %v604
    %v1022 = vadd.f32 %v1021, %v607
    %v1023 = vadd.f32 %v1022, %v612
    %v1024 = vadd.f32 %v1023, %v615
    %v1025 = vadd.f32 %v1024, %v620
    %v1026 = vadd.f32 %v1025, %v623
    %v1027 = vadd.f32 %v1026, %v628
    %v1028 = vadd.f32 %v1027, %v631
    %v1029 = vadd.f32 %v1028, %v636
    %v1030 = vadd.f32 %v1029, %v639
    %v1031 = vadd.f32 %v1030, %v644
    %v1032 = vadd.f32 %v1031, %v647
    %v1033 = vrot.slane %v1032, 4
    %v1034 = vadd.f32 %v1032, %v1033
    %v1035 = vrot.slane %v1034, 2
    %v1036 = vadd.f32 %v1034, %v1035
    %v1037 = vrot.slane %v1036, 1
    %v1038 = vadd.f32 %v1036, %v1037
    %1039 = vst [vmem:[#allocation4] sm:$0x1] %v1038
    %v1040 = vmul.f32 %v396, %v396
    %v1041 = vmul.f32 %v399, %v399
    %v1042 = vmul.f32 %v404, %v404
    %v1043 = vmul.f32 %v407, %v407
    %v1044 = vmul.f32 %v412, %v412
    %v1045 = vmul.f32 %v415, %v415
    %v1046 = vmul.f32 %v420, %v420
    %v1047 = vmul.f32 %v423, %v423
    %v1048 = vmul.f32 %v428, %v428
    %v1049 = vmul.f32 %v431, %v431
    %v1050 = vmul.f32 %v436, %v436
    %v1051 = vmul.f32 %v439, %v439
    %v1052 = vmul.f32 %v444, %v444
    %v1053 = vmul.f32 %v447, %v447
    %v1054 = vmul.f32 %v452, %v452
    %v1055 = vmul.f32 %v455, %v455
    %v1056 = vmul.f32 %v460, %v460
    %v1057 = vmul.f32 %v463, %v463
    %v1058 = vmul.f32 %v468, %v468
    %v1059 = vmul.f32 %v471, %v471
    %v1060 = vmul.f32 %v476, %v476
    %v1061 = vmul.f32 %v479, %v479
    %v1062 = vmul.f32 %v484, %v484
    %v1063 = vmul.f32 %v487, %v487
    %v1064 = vmul.f32 %v492, %v492
    %v1065 = vmul.f32 %v495, %v495
    %v1066 = vmul.f32 %v500, %v500
    %v1067 = vmul.f32 %v503, %v503
    %v1068 = vmul.f32 %v508, %v508
    %v1069 = vmul.f32 %v511, %v511
    %v1070 = vmul.f32 %v516, %v516
    %v1071 = vmul.f32 %v519, %v519
    %v1072 = vmul.f32 %v524, %v524
    %v1073 = vmul.f32 %v527, %v527
    %v1074 = vmul.f32 %v532, %v532
    %v1075 = vmul.f32 %v535, %v535
    %v1076 = vmul.f32 %v540, %v540
    %v1077 = vmul.f32 %v543, %v543
    %v1078 = vmul.f32 %v548, %v548
    %v1079 = vmul.f32 %v551, %v551
    %v1080 = vmul.f32 %v556, %v556
    %v1081 = vmul.f32 %v559, %v559
    %v1082 = vmul.f32 %v564, %v564
    %v1083 = vmul.f32 %v567, %v567
    %v1084 = vmul.f32 %v572, %v572
    %v1085 = vmul.f32 %v575, %v575
    %v1086 = vmul.f32 %v580, %v580
    %v1087 = vmul.f32 %v583, %v583
    %v1088 = vmul.f32 %v588, %v588
    %v1089 = vmul.f32 %v591, %v591
    %v1090 = vmul.f32 %v596, %v596
    %v1091 = vmul.f32 %v599, %v599
    %v1092 = vmul.f32 %v604, %v604
    %v1093 = vmul.f32 %v607, %v607
    %v1094 = vmul.f32 %v612, %v612
    %v1095 = vmul.f32 %v615, %v615
    %v1096 = vmul.f32 %v620, %v620
    %v1097 = vmul.f32 %v623, %v623
    %v1098 = vmul.f32 %v628, %v628
    %v1099 = vmul.f32 %v631, %v631
    %v1100 = vmul.f32 %v636, %v636
    %v1101 = vmul.f32 %v639, %v639
    %v1102 = vmul.f32 %v644, %v644
    %v1103 = vmul.f32 %v647, %v647
    %v1104 = vadd.f32 %v1040, %v1041
    %v1105 = vadd.f32 %v1104, %v1042
    %v1106 = vadd.f32 %v1105, %v1043
    %v1107 = vadd.f32 %v1106, %v1044
    %v1108 = vadd.f32 %v1107, %v1045
    %v1109 = vadd.f32 %v1108, %v1046
    %v1110 = vadd.f32 %v1109, %v1047
    %v1111 = vadd.f32 %v1110, %v1048
    %v1112 = vadd.f32 %v1111, %v1049
    %v1113 = vadd.f32 %v1112, %v1050
    %v1114 = vadd.f32 %v1113, %v1051
    %v1115 = vadd.f32 %v1114, %v1052
    %v1116 = vadd.f32 %v1115, %v1053
    %v1117 = vadd.f32 %v1116, %v1054
    %v1118 = vadd.f32 %v1117, %v1055
    %v1119 = vadd.f32 %v1118, %v1056
    %v1120 = vadd.f32 %v1119, %v1057
    %v1121 = vadd.f32 %v1120, %v1058
    %v1122 = vadd.f32 %v1121, %v1059
    %v1123 = vadd.f32 %v1122, %v1060
    %v1124 = vadd.f32 %v1123, %v1061
    %v1125 = vadd.f32 %v1124, %v1062
    %v1126 = vadd.f32 %v1125, %v1063
    %v1127 = vadd.f32 %v1126, %v1064
    %v1128 = vadd.f32 %v1127, %v1065
    %v1129 = vadd.f32 %v1128, %v1066
    %v1130 = vadd.f32 %v1129, %v1067
    %v1131 = vadd.f32 %v1130, %v1068
    %v1132 = vadd.f32 %v1131, %v1069
    %v1133 = vadd.f32 %v1132, %v1070
    %v1134 = vadd.f32 %v1133, %v1071
    %v1135 = vadd.f32 %v1134, %v1072
    %v1136 = vadd.f32 %v1135, %v1073
    %v1137 = vadd.f32 %v1136, %v1074
    %v1138 = vadd.f32 %v1137, %v1075
    %v1139 = vadd.f32 %v1138, %v1076
    %v1140 = vadd.f32 %v1139, %v1077
    %v1141 = vadd.f32 %v1140, %v1078
    %v1142 = vadd.f32 %v1141, %v1079
    %v1143 = vadd.f32 %v1142, %v1080
    %v1144 = vadd.f32 %v1143, %v1081
    %v1145 = vadd.f32 %v1144, %v1082
    %v1146 = vadd.f32 %v1145, %v1083
    %v1147 = vadd.f32 %v1146, %v1084
    %v1148 = vadd.f32 %v1147, %v1085
    %v1149 = vadd.f32 %v1148, %v1086
    %v1150 = vadd.f32 %v1149, %v1087
    %v1151 = vadd.f32 %v1150, %v1088
    %v1152 = vadd.f32 %v1151, %v1089
    %v1153 = vadd.f32 %v1152, %v1090
    %v1154 = vadd.f32 %v1153, %v1091
    %v1155 = vadd.f32 %v1154, %v1092
    %v1156 = vadd.f32 %v1155, %v1093
    %v1157 = vadd.f32 %v1156, %v1094
    %v1158 = vadd.f32 %v1157, %v1095
    %v1159 = vadd.f32 %v1158, %v1096
    %v1160 = vadd.f32 %v1159, %v1097
    %v1161 = vadd.f32 %v1160, %v1098
    %v1162 = vadd.f32 %v1161, %v1099
    %v1163 = vadd.f32 %v1162, %v1100
    %v1164 = vadd.f32 %v1163, %v1101
    %v1165 = vadd.f32 %v1164, %v1102
    %v1166 = vadd.f32 %v1165, %v1103
    %v1167 = vrot.slane %v1166, 4
    %v1168 = vadd.f32 %v1166, %v1167
    %v1169 = vrot.slane %v1168, 2
    %v1170 = vadd.f32 %v1168, %v1169
    %v1171 = vrot.slane %v1170, 1
    %v1172 = vadd.f32 %v1170, %v1171
    %1173 = vst [vmem:[#allocation4 + $0x1] sm:$0x1] %v1172
    // Predicated region
    $region10: #{tpu_custom_call.1} parent=1 // pred_check
      _
    $region11: #{tpu_custom_call.1} parent=1 // pred_check_branch
      %1175 = sbr.rel (0) target = $region13
    $region12: #{tpu_custom_call.1} parent=1 // pred_region
      %s1177 = ssub.s32 4096, 4096
      %1178 = vsyncadd [#allocation3], %s1177
      %s1179 = sshll.u32 [#allocation2], 4
      %s1180 = int_to_ptr.vmem [resolvable:$true] %s1179
      %1185 = dma.vmem_to_hbm [thread:$0]  %s1180, 4096, %s2, [#allocation3], 64, 64, 4
    $region13: #{tpu_custom_call.1} parent=1 // pred_fallthru
      _
    // Predicated region
    $region14: #{tpu_custom_call.1} parent=1 // pred_check
      _
    $region15: #{tpu_custom_call.1} parent=1 // pred_check_branch
      %1187 = sbr.rel (0) target = $region17
    $region16: #{tpu_custom_call.1} parent=1 // pred_region
      %s1189 = ssub.s32 32, 32
      %1190 = vsyncadd [#allocation5], %s1189
      %s1192 = sshll.u32 [#allocation4], 4
      %s1193 = int_to_ptr.vmem [resolvable:$true] %s1192
      %1195 = dma.vmem_to_hbm [thread:$0]  %s1193, 32, %s3, [#allocation5]
    $region17: #{tpu_custom_call.1} parent=1 // pred_fallthru
      _
    // Predicated region
    $region18: #{tpu_custom_call.1} parent=1 // pred_check
      _
    $region19: #{tpu_custom_call.1} parent=1 // pred_check_branch
      %1197 = sbr.rel (0) target = $region21
    $region20: #{tpu_custom_call.1} parent=1 // pred_region
      %1198 = dma.done [#allocation3], 4096
    $region21: #{tpu_custom_call.1} parent=1 // pred_fallthru
      _
    // Predicated region
    $region22: #{tpu_custom_call.1} parent=1 // pred_check
      _
    $region23: #{tpu_custom_call.1} parent=1 // pred_check_branch
      %1200 = sbr.rel (0) target = $region25
    $region24: #{tpu_custom_call.1} parent=1 // pred_region
      %1201 = dma.done [#allocation5], 32
    $region25: #{tpu_custom_call.1} parent=1 // pred_fallthru
      _
    %1202 = vsyncpa [#allocation3], 1
    %1203 = vsyncpa [#allocation5], 1

</llo_original>
